<compile_context>
chip_gen: v6e
topology: v6e:2x2x1
jax: 0.10.0
libtpu: 0.0.40
codegen_flags: <defaults>
</compile_context>

<pallas_src>
import jax
import jax.numpy as jnp
from jax.experimental import pallas as pl
from jax.experimental.pallas import tpu as pltpu

# Fixed architecture of RegimeFilterLite: Linear(5,3) -> ReLU -> Linear(3,2).
_F, _H, _O = 5, 3, 2
_W1_OFF = 0
_B1_OFF = _W1_OFF + _F * _H          # 15
_W2_OFF = _B1_OFF + _H               # 18
_B2_OFF = _W2_OFF + _H * _O          # 24
_N_PARAMS = _B2_OFF + _O             # 26

_LANE = 128


def _round_up(x, m):
    return ((x + m - 1) // m) * m


def _cdiv(a, b):
    return (a + b - 1) // b


def _regime_filter_kernel(params_ref, x_ref, o_ref):
    """params_ref: SMEM f32[26]; x_ref: VMEM [5, TB]; o_ref: VMEM [2, TB]."""
    x = x_ref[...].astype(jnp.float32)                     # [F, TB]

    # Hidden layer: h_j = relu(b1[j] + sum_k w1[k, j] * x[k, :])
    # Bias folded into the first product term (separate mul/add on v5e/v6e VALU).
    hidden = []
    for j in range(_H):
        acc = x[0:1, :] * params_ref[_W1_OFF + 0 * _H + j] + params_ref[_B1_OFF + j]
        for k in range(1, _F):
            acc = acc + x[k:k + 1, :] * params_ref[_W1_OFF + k * _H + j]
        hidden.append(jnp.maximum(acc, 0.0))

    # Output layer: y_i = b2[i] + sum_k w2[k, i] * h_k   (direct row stores, no concat)
    for i in range(_O):
        acc = hidden[0] * params_ref[_W2_OFF + 0 * _O + i] + params_ref[_B2_OFF + i]
        for k in range(1, _H):
            acc = acc + hidden[k] * params_ref[_W2_OFF + k * _O + i]
        o_ref[i:i + 1, :] = acc.astype(o_ref.dtype)


def _pack_params(w1, b1, w2, b2):
    params = jnp.concatenate(
        [w1.reshape(-1), b1.reshape(-1), w2.reshape(-1), b2.reshape(-1)]
    ).astype(jnp.float32)
    assert params.shape == (_N_PARAMS,)
    return params


def regime_filter_lite_feature_major(x_fm, w1, b1, w2, b2, *,
                                     tb_max=65536, n_steps_target=4):
    """Feature-major entry point: x_fm [5, B] -> logits [2, B].

    This avoids any wrapper transpose (the plumbing was ~2/3 of end-to-end HBM time for
    the batch-major API).  Weights are stored [in, out] (transpose of PyTorch nn.Linear
    [out, in]), so the math is y = relu(x @ w1 + b1) @ w2 + b2 per batch column.
    """
    F, B = x_fm.shape
    assert F == _F and w1.shape == (_F, _H) and b1.shape == (_H,)
    assert w2.shape == (_H, _O) and b2.shape == (_O,)

    params = _pack_params(w1, b1, w2, b2)

    # Tile selection: aim for >= n_steps_target grid steps (keeps v7x's 2 TCs busy and
    # amortizes the ~0.35 us/step overhead) without over-padding awkward batch sizes,
    # capped at tb_max lanes to stay inside per-generation VMEM budgets.
    tb_eff = _round_up(_cdiv(B, max(1, n_steps_target)), _LANE)
    tb_eff = max(_LANE, min(tb_eff, _round_up(tb_max, _LANE)))
    b_pad = _round_up(B, tb_eff)
    n_steps = b_pad // tb_eff

    # Lane-pad only (no transpose); cheap relative to the kernel's own traffic.
    x_p = jnp.pad(x_fm, ((0, 0), (0, b_pad - B)))

    # VMEM budget: (5,TB) and (2,TB) blocks each pad to 8 sublanes (f32) -> 32*TB bytes
    # per block; double-buffered in+out -> ~128*TB bytes total.  Add margin, clamp.
    vmem_limit = min(max(128 * tb_eff + (4 << 20), 16 << 20), 48 << 20)

    itemsize = jnp.dtype(x_fm.dtype).itemsize
    cost = pl.CostEstimate(
        flops=31 * b_pad,                                   # ~21 FMA-ish + adds per column
        transcendentals=0,
        bytes_accessed=(_F + _O) * b_pad * itemsize,
    )

    out_fm = pl.pallas_call(
        _regime_filter_kernel,
        out_shape=jax.ShapeDtypeStruct((_O, b_pad), x_fm.dtype),
        grid=(n_steps,),
        in_specs=[
            pl.BlockSpec(memory_space=pltpu.MemorySpace.SMEM),   # params: whole array in SMEM
            pl.BlockSpec((_F, tb_eff), lambda i: (0, i)),        # x tile, batch on lanes
        ],
        out_specs=pl.BlockSpec((_O, tb_eff), lambda i: (0, i)),
        compiler_params=pltpu.CompilerParams(
            dimension_semantics=("parallel",),                   # shards across v7x's 2 TCs
            vmem_limit_bytes=vmem_limit,
        ),
        cost_estimate=cost,
    )(params, x_p)

    return out_fm[:, :B]                                     # [2, B]


def regime_filter_lite(x, w1, b1, w2, b2, *, tb_max=65536, n_steps_target=4):
    """Batch-major convenience wrapper: x [B, 5] -> logits [B, 2].

    NOTE: the transpose plumbing here (x.T and the final .T) roughly doubles end-to-end
    HBM traffic; prefer regime_filter_lite_feature_major when the surrounding graph can
    keep activations feature-major.  bf16 x is also accepted (accumulation stays f32
    in-kernel), halving HBM bytes if precision allows.
    """
    B, F = x.shape
    assert F == _F
    out_fm = regime_filter_lite_feature_major(
        x.T, w1, b1, w2, b2, tb_max=tb_max, n_steps_target=n_steps_target)
    return out_fm.T                                          # [B, 2]


def _init_params(key):
    """Deterministic init matching nn.Linear shapes (uniform +-1/sqrt(fan_in))."""
    k1, k2, k3, k4 = jax.random.split(key, 4)
    lim1 = 1.0 / jnp.sqrt(5.0)
    lim2 = 1.0 / jnp.sqrt(3.0)
    # Stored as [in, out] (transpose of PyTorch's [out, in]).
    w1 = jax.random.uniform(k1, (5, 3), jnp.float32, -lim1, lim1)
    b1 = jax.random.uniform(k2, (3,), jnp.float32, -lim1, lim1)
    w2 = jax.random.uniform(k3, (3, 2), jnp.float32, -lim2, lim2)
    b2 = jax.random.uniform(k4, (2,), jnp.float32, -lim2, lim2)
    return w1, b1, w2, b2


def _reference(x, w1, b1, w2, b2):
    # Same math as the PyTorch forward.
    return jnp.maximum(x @ w1 + b1, 0.0) @ w2 + b2


if __name__ == "__main__":
    key = jax.random.PRNGKey(0)
    k_x1, k_x2, k_p = jax.random.split(key, 3)
    w1, b1, w2, b2 = _init_params(k_p)

    # Small demo batch (single lane-dense tile) via the batch-major wrapper.
    x_small = jax.random.normal(k_x1, (8, 5), dtype=jnp.float32)
    logits_small = regime_filter_lite(x_small, w1, b1, w2, b2)
    jax.block_until_ready(logits_small)
    assert logits_small.shape == (8, 2)
    assert jnp.allclose(
        logits_small, _reference(x_small, w1, b1, w2, b2), atol=1e-5, rtol=1e-5
    )

    # Non-multiple batch: exercises lane padding + a multi-step "parallel" grid
    # (n_steps_target=4 -> tb_eff=384, 3 tiles).
    x_big = jax.random.normal(k_x2, (1037, 5), dtype=jnp.float32)
    logits_big = regime_filter_lite(x_big, w1, b1, w2, b2)
    jax.block_until_ready(logits_big)
    assert logits_big.shape == (1037, 2)
    assert jnp.allclose(
        logits_big, _reference(x_big, w1, b1, w2, b2), atol=1e-5, rtol=1e-5
    )

    # Feature-major path (no transpose plumbing at all).
    logits_fm = regime_filter_lite_feature_major(x_big.T, w1, b1, w2, b2)
    jax.block_until_ready(logits_fm)
    assert logits_fm.shape == (2, 1037)
    assert jnp.allclose(
        logits_fm.T, _reference(x_big, w1, b1, w2, b2), atol=1e-5, rtol=1e-5
    )

    print("KERNEL_OK")
</pallas_src>

<mosaic_0001>
module attributes {stable_mosaic.version = 11 : i64} {
  func.func @_regime_filter_kernel(%arg0: i32, %arg1: memref<26xf32, #tpu.memory_space<smem>>, %arg2: memref<5x128xf32, #tpu.memory_space<vmem>>, %arg3: memref<2x128xf32, #tpu.memory_space<vmem>>) attributes {dimension_semantics = [#tpu.dimension_semantics<parallel>], iteration_bounds = array<i64: 1>, scalar_prefetch = 0 : i64, scratch_operands = 0 : i64, tpu.core_type = #tpu.core_type<tc>, window_params = [{transform_indices = @transform_0, window_bounds = array<i64: 26>}, {transform_indices = @transform_1, window_bounds = array<i64: 5, 128>}, {transform_indices = @transform_2, window_bounds = array<i64: 2, 128>}]} {
    %c0 = arith.constant 0 : index
    %c0_0 = arith.constant 0 : index
    %0 = vector.load %arg2[%c0, %c0_0] : memref<5x128xf32, #tpu.memory_space<vmem>>, vector<5x128xf32>
    %1 = vector.extract_strided_slice %0 {offsets = [0, 0], sizes = [1, 128], strides = [1, 1]} : vector<5x128xf32> to vector<1x128xf32>
    %c0_1 = arith.constant 0 : index
    %2 = memref.load %arg1[%c0_1] : memref<26xf32, #tpu.memory_space<smem>>
    %3 = vector.broadcast %2 : f32 to vector<1x128xf32>
    %4 = arith.mulf %1, %3 : vector<1x128xf32>
    %c15 = arith.constant 15 : index
    %5 = memref.load %arg1[%c15] : memref<26xf32, #tpu.memory_space<smem>>
    %6 = vector.broadcast %5 : f32 to vector<1x128xf32>
    %7 = arith.addf %4, %6 : vector<1x128xf32>
    %8 = vector.extract_strided_slice %0 {offsets = [1, 0], sizes = [1, 128], strides = [1, 1]} : vector<5x128xf32> to vector<1x128xf32>
    %c3 = arith.constant 3 : index
    %9 = memref.load %arg1[%c3] : memref<26xf32, #tpu.memory_space<smem>>
    %10 = vector.broadcast %9 : f32 to vector<1x128xf32>
    %11 = arith.mulf %8, %10 : vector<1x128xf32>
    %12 = arith.addf %7, %11 : vector<1x128xf32>
    %13 = vector.extract_strided_slice %0 {offsets = [2, 0], sizes = [1, 128], strides = [1, 1]} : vector<5x128xf32> to vector<1x128xf32>
    %c6 = arith.constant 6 : index
    %14 = memref.load %arg1[%c6] : memref<26xf32, #tpu.memory_space<smem>>
    %15 = vector.broadcast %14 : f32 to vector<1x128xf32>
    %16 = arith.mulf %13, %15 : vector<1x128xf32>
    %17 = arith.addf %12, %16 : vector<1x128xf32>
    %18 = vector.extract_strided_slice %0 {offsets = [3, 0], sizes = [1, 128], strides = [1, 1]} : vector<5x128xf32> to vector<1x128xf32>
    %c9 = arith.constant 9 : index
    %19 = memref.load %arg1[%c9] : memref<26xf32, #tpu.memory_space<smem>>
    %20 = vector.broadcast %19 : f32 to vector<1x128xf32>
    %21 = arith.mulf %18, %20 : vector<1x128xf32>
    %22 = arith.addf %17, %21 : vector<1x128xf32>
    %23 = vector.extract_strided_slice %0 {offsets = [4, 0], sizes = [1, 128], strides = [1, 1]} : vector<5x128xf32> to vector<1x128xf32>
    %c12 = arith.constant 12 : index
    %24 = memref.load %arg1[%c12] : memref<26xf32, #tpu.memory_space<smem>>
    %25 = vector.broadcast %24 : f32 to vector<1x128xf32>
    %26 = arith.mulf %23, %25 : vector<1x128xf32>
    %27 = arith.addf %22, %26 : vector<1x128xf32>
    %cst = arith.constant 0.000000e+00 : f32
    %28 = vector.broadcast %cst : f32 to vector<1x128xf32>
    %29 = arith.maximumf %27, %28 : vector<1x128xf32>
    %30 = vector.extract_strided_slice %0 {offsets = [0, 0], sizes = [1, 128], strides = [1, 1]} : vector<5x128xf32> to vector<1x128xf32>
    %c1 = arith.constant 1 : index
    %31 = memref.load %arg1[%c1] : memref<26xf32, #tpu.memory_space<smem>>
    %32 = vector.broadcast %31 : f32 to vector<1x128xf32>
    %33 = arith.mulf %30, %32 : vector<1x128xf32>
    %c16 = arith.constant 16 : index
    %34 = memref.load %arg1[%c16] : memref<26xf32, #tpu.memory_space<smem>>
    %35 = vector.broadcast %34 : f32 to vector<1x128xf32>
    %36 = arith.addf %33, %35 : vector<1x128xf32>
    %37 = vector.extract_strided_slice %0 {offsets = [1, 0], sizes = [1, 128], strides = [1, 1]} : vector<5x128xf32> to vector<1x128xf32>
    %c4 = arith.constant 4 : index
    %38 = memref.load %arg1[%c4] : memref<26xf32, #tpu.memory_space<smem>>
    %39 = vector.broadcast %38 : f32 to vector<1x128xf32>
    %40 = arith.mulf %37, %39 : vector<1x128xf32>
    %41 = arith.addf %36, %40 : vector<1x128xf32>
    %42 = vector.extract_strided_slice %0 {offsets = [2, 0], sizes = [1, 128], strides = [1, 1]} : vector<5x128xf32> to vector<1x128xf32>
    %c7 = arith.constant 7 : index
    %43 = memref.load %arg1[%c7] : memref<26xf32, #tpu.memory_space<smem>>
    %44 = vector.broadcast %43 : f32 to vector<1x128xf32>
    %45 = arith.mulf %42, %44 : vector<1x128xf32>
    %46 = arith.addf %41, %45 : vector<1x128xf32>
    %47 = vector.extract_strided_slice %0 {offsets = [3, 0], sizes = [1, 128], strides = [1, 1]} : vector<5x128xf32> to vector<1x128xf32>
    %c10 = arith.constant 10 : index
    %48 = memref.load %arg1[%c10] : memref<26xf32, #tpu.memory_space<smem>>
    %49 = vector.broadcast %48 : f32 to vector<1x128xf32>
    %50 = arith.mulf %47, %49 : vector<1x128xf32>
    %51 = arith.addf %46, %50 : vector<1x128xf32>
    %52 = vector.extract_strided_slice %0 {offsets = [4, 0], sizes = [1, 128], strides = [1, 1]} : vector<5x128xf32> to vector<1x128xf32>
    %c13 = arith.constant 13 : index
    %53 = memref.load %arg1[%c13] : memref<26xf32, #tpu.memory_space<smem>>
    %54 = vector.broadcast %53 : f32 to vector<1x128xf32>
    %55 = arith.mulf %52, %54 : vector<1x128xf32>
    %56 = arith.addf %51, %55 : vector<1x128xf32>
    %cst_2 = arith.constant 0.000000e+00 : f32
    %57 = vector.broadcast %cst_2 : f32 to vector<1x128xf32>
    %58 = arith.maximumf %56, %57 : vector<1x128xf32>
    %59 = vector.extract_strided_slice %0 {offsets = [0, 0], sizes = [1, 128], strides = [1, 1]} : vector<5x128xf32> to vector<1x128xf32>
    %c2 = arith.constant 2 : index
    %60 = memref.load %arg1[%c2] : memref<26xf32, #tpu.memory_space<smem>>
    %61 = vector.broadcast %60 : f32 to vector<1x128xf32>
    %62 = arith.mulf %59, %61 : vector<1x128xf32>
    %c17 = arith.constant 17 : index
    %63 = memref.load %arg1[%c17] : memref<26xf32, #tpu.memory_space<smem>>
    %64 = vector.broadcast %63 : f32 to vector<1x128xf32>
    %65 = arith.addf %62, %64 : vector<1x128xf32>
    %66 = vector.extract_strided_slice %0 {offsets = [1, 0], sizes = [1, 128], strides = [1, 1]} : vector<5x128xf32> to vector<1x128xf32>
    %c5 = arith.constant 5 : index
    %67 = memref.load %arg1[%c5] : memref<26xf32, #tpu.memory_space<smem>>
    %68 = vector.broadcast %67 : f32 to vector<1x128xf32>
    %69 = arith.mulf %66, %68 : vector<1x128xf32>
    %70 = arith.addf %65, %69 : vector<1x128xf32>
    %71 = vector.extract_strided_slice %0 {offsets = [2, 0], sizes = [1, 128], strides = [1, 1]} : vector<5x128xf32> to vector<1x128xf32>
    %c8 = arith.constant 8 : index
    %72 = memref.load %arg1[%c8] : memref<26xf32, #tpu.memory_space<smem>>
    %73 = vector.broadcast %72 : f32 to vector<1x128xf32>
    %74 = arith.mulf %71, %73 : vector<1x128xf32>
    %75 = arith.addf %70, %74 : vector<1x128xf32>
    %76 = vector.extract_strided_slice %0 {offsets = [3, 0], sizes = [1, 128], strides = [1, 1]} : vector<5x128xf32> to vector<1x128xf32>
    %c11 = arith.constant 11 : index
    %77 = memref.load %arg1[%c11] : memref<26xf32, #tpu.memory_space<smem>>
    %78 = vector.broadcast %77 : f32 to vector<1x128xf32>
    %79 = arith.mulf %76, %78 : vector<1x128xf32>
    %80 = arith.addf %75, %79 : vector<1x128xf32>
    %81 = vector.extract_strided_slice %0 {offsets = [4, 0], sizes = [1, 128], strides = [1, 1]} : vector<5x128xf32> to vector<1x128xf32>
    %c14 = arith.constant 14 : index
    %82 = memref.load %arg1[%c14] : memref<26xf32, #tpu.memory_space<smem>>
    %83 = vector.broadcast %82 : f32 to vector<1x128xf32>
    %84 = arith.mulf %81, %83 : vector<1x128xf32>
    %85 = arith.addf %80, %84 : vector<1x128xf32>
    %cst_3 = arith.constant 0.000000e+00 : f32
    %86 = vector.broadcast %cst_3 : f32 to vector<1x128xf32>
    %87 = arith.maximumf %85, %86 : vector<1x128xf32>
    %c18 = arith.constant 18 : index
    %88 = memref.load %arg1[%c18] : memref<26xf32, #tpu.memory_space<smem>>
    %89 = vector.broadcast %88 : f32 to vector<1x128xf32>
    %90 = arith.mulf %29, %89 : vector<1x128xf32>
    %c24 = arith.constant 24 : index
    %91 = memref.load %arg1[%c24] : memref<26xf32, #tpu.memory_space<smem>>
    %92 = vector.broadcast %91 : f32 to vector<1x128xf32>
    %93 = arith.addf %90, %92 : vector<1x128xf32>
    %c20 = arith.constant 20 : index
    %94 = memref.load %arg1[%c20] : memref<26xf32, #tpu.memory_space<smem>>
    %95 = vector.broadcast %94 : f32 to vector<1x128xf32>
    %96 = arith.mulf %58, %95 : vector<1x128xf32>
    %97 = arith.addf %93, %96 : vector<1x128xf32>
    %c22 = arith.constant 22 : index
    %98 = memref.load %arg1[%c22] : memref<26xf32, #tpu.memory_space<smem>>
    %99 = vector.broadcast %98 : f32 to vector<1x128xf32>
    %100 = arith.mulf %87, %99 : vector<1x128xf32>
    %101 = arith.addf %97, %100 : vector<1x128xf32>
    %c0_4 = arith.constant 0 : index
    %c0_5 = arith.constant 0 : index
    %102 = vector.load %arg3[%c0_4, %c0_5] : memref<2x128xf32, #tpu.memory_space<vmem>>, vector<1x128xf32>
    tpu.vector_store %arg3[%c0_4, %c0_5], %101 {strides = array<i32>} : memref<2x128xf32, #tpu.memory_space<vmem>>, vector<1x128xf32>,
    %c19 = arith.constant 19 : index
    %103 = memref.load %arg1[%c19] : memref<26xf32, #tpu.memory_space<smem>>
    %104 = vector.broadcast %103 : f32 to vector<1x128xf32>
    %105 = arith.mulf %29, %104 : vector<1x128xf32>
    %c25 = arith.constant 25 : index
    %106 = memref.load %arg1[%c25] : memref<26xf32, #tpu.memory_space<smem>>
    %107 = vector.broadcast %106 : f32 to vector<1x128xf32>
    %108 = arith.addf %105, %107 : vector<1x128xf32>
    %c21 = arith.constant 21 : index
    %109 = memref.load %arg1[%c21] : memref<26xf32, #tpu.memory_space<smem>>
    %110 = vector.broadcast %109 : f32 to vector<1x128xf32>
    %111 = arith.mulf %58, %110 : vector<1x128xf32>
    %112 = arith.addf %108, %111 : vector<1x128xf32>
    %c23 = arith.constant 23 : index
    %113 = memref.load %arg1[%c23] : memref<26xf32, #tpu.memory_space<smem>>
    %114 = vector.broadcast %113 : f32 to vector<1x128xf32>
    %115 = arith.mulf %87, %114 : vector<1x128xf32>
    %116 = arith.addf %112, %115 : vector<1x128xf32>
    %c1_6 = arith.constant 1 : index
    %c0_7 = arith.constant 0 : index
    %117 = vector.load %arg3[%c1_6, %c0_7] : memref<2x128xf32, #tpu.memory_space<vmem>>, vector<1x128xf32>
    tpu.vector_store %arg3[%c1_6, %c0_7], %116 {strides = array<i32>} : memref<2x128xf32, #tpu.memory_space<vmem>>, vector<1x128xf32>,
    return
  }
  func.func @transform_0(%arg0: i32) -> i32 {
    %c0_i32 = arith.constant 0 : i32
    %c0_i32_0 = arith.constant 0 : i32
    return %c0_i32 : i32
  }
  func.func @transform_1(%arg0: i32) -> (i32, i32) {
    %c0_i32 = arith.constant 0 : i32
    %c0_i32_0 = arith.constant 0 : i32
    return %c0_i32, %arg0 : i32, i32
  }
  func.func @transform_2(%arg0: i32) -> (i32, i32) {
    %c0_i32 = arith.constant 0 : i32
    %c0_i32_0 = arith.constant 0 : i32
    return %c0_i32, %arg0 : i32, i32
  }
}

</mosaic_0001>

<llo_original>
// kernel: tpu_custom_call.1
$region0: #{tpu_custom_call.1}
  #allocation0 [shape = 'u32[]', space=smem, size = 0x4, offset = 0x4, fixed_abs, tag = 'smem constant byte address 0x4 - core index']
  #allocation1 [shape = 'u32[144,128]{1,0:T(1,128)}', space=vmem, size = 0x12000, scoped, tag = 'internal scratch']
  %s0 = inlined_call_operand.hbm [shape: f32[26], index: 0, kind: input, shape index: {}]
  %s1 = inlined_call_operand.hbm [shape: f32[5,128], index: 1, kind: input, shape index: {}]
  %s2 = inlined_call_operand.hbm [shape: f32[2,128], index: 2, kind: output, shape index: {}]
  %s3 = sld [smem:[#allocation0]]
  $region26: #{tpu_custom_call.1} parent=0
    _
  %s5 = ssub.s32 1, %s3
  %s6 = scalar_select 0, %s5, %s3
  $region1: #{tpu_custom_call.1} parent=0
    #allocation2 [shape = 'u8[512]{0}', space=smem, size = 0x200, scoped, tag = 'input window, operand 0, single buffered']
    #allocation3 [shape = 's32[1]{0}', space=sflag, size = 0x4, scoped, tag = 'scoped memory for tpu_custom_call.1']
    #allocation4 [shape = 's32[1]{0}', space=sflag, size = 0x4, scoped, tag = 'scoped memory for tpu_custom_call.1']
    #allocation5 [shape = 's32[1]{0}', space=sflag, size = 0x4, scoped, tag = 'scoped memory for tpu_custom_call.1']
    #allocation6 [shape = 'u8[4096]{0}', space=vmem, size = 0x1000, scoped, tag = 'input window, operand 1, single buffered']
    #allocation7 [shape = 'u8[1024]{0}', space=vmem, size = 0x400, scoped, tag = 'output window, operand 0, single buffered']
    %7 = vsyncpa [#allocation5], 0
    %8 = vsyncpa [#allocation3], 0
    %9 = vsyncpa [#allocation4], 0
    // Predicated region
    $region2: #{tpu_custom_call.1} parent=1 // pred_check
      _
    $region3: #{tpu_custom_call.1} parent=1 // pred_check_branch
      %11 = sbr.rel (0) target = $region5
    $region4: #{tpu_custom_call.1} parent=1 // pred_region
      %s13 = ssub.s32 16, 16
      %14 = vsyncadd [#allocation5], %s13
      %17 = dma.hbm_to_smem %s0, 16, [#allocation2], [#allocation5]
    $region5: #{tpu_custom_call.1} parent=1 // pred_fallthru
      _
    // Predicated region
    $region6: #{tpu_custom_call.1} parent=1 // pred_check
      _
    $region7: #{tpu_custom_call.1} parent=1 // pred_check_branch
      %19 = sbr.rel (0) target = $region9
    $region8: #{tpu_custom_call.1} parent=1 // pred_region
      %s21 = ssub.s32 128, 128
      %22 = vsyncadd [#allocation3], %s21
      %s24 = sshll.u32 [#allocation6], 4
      %s25 = int_to_ptr.vmem [resolvable:$true] %s24
      %27 = dma.hbm_to_vmem [thread:$0]  %s1, 128, %s25, [#allocation3]
    $region9: #{tpu_custom_call.1} parent=1 // pred_fallthru
      _
    // Predicated region
    $region10: #{tpu_custom_call.1} parent=1 // pred_check
      _
    $region11: #{tpu_custom_call.1} parent=1 // pred_check_branch
      %29 = sbr.rel (0) target = $region13
    $region12: #{tpu_custom_call.1} parent=1 // pred_region
      %30 = dma.done [#allocation5], 16
    $region13: #{tpu_custom_call.1} parent=1 // pred_fallthru
      _
    // Predicated region
    $region14: #{tpu_custom_call.1} parent=1 // pred_check
      _
    $region15: #{tpu_custom_call.1} parent=1 // pred_check_branch
      %32 = sbr.rel (0) target = $region17
    $region16: #{tpu_custom_call.1} parent=1 // pred_region
      %33 = dma.done [#allocation3], 128
    $region17: #{tpu_custom_call.1} parent=1 // pred_fallthru
      _
    %34 = sfence
    %v35 = vld [vmem:[#allocation6] sm:$0x1f]
    %s36 = sld [smem:[#allocation2]]
    %v37 = vstv %s36
    %v38 = vmul.f32 %v35, %v37
    %s39 = sld [smem:[#allocation2 + $0xf]]
    %v40 = vstv %s39
    %v41 = vadd.f32 %v38, %v40
    %s42 = sld [smem:[#allocation2 + $0x3]]
    %v43 = vstv %s42
    %v44 = vmul.f32 %v35, %v43
    %v46 = vrot.slane %v44, 1
    %v48 = vadd.f32 %v41, %v46
    %s49 = sld [smem:[#allocation2 + $0x6]]
    %v50 = vstv %s49
    %v51 = vmul.f32 %v35, %v50
    %v53 = vrot.slane %v51, 2
    %v55 = vadd.f32 %v48, %v53
    %s56 = sld [smem:[#allocation2 + $0x9]]
    %v57 = vstv %s56
    %v58 = vmul.f32 %v35, %v57
    %v60 = vrot.slane %v58, 3
    %v62 = vadd.f32 %v55, %v60
    %s63 = sld [smem:[#allocation2 + $0xc]]
    %v64 = vstv %s63
    %v65 = vmul.f32 %v35, %v64
    %v67 = vrot.slane %v65, 4
    %v69 = vadd.f32 %v62, %v67
    %v70 = vmax.f32 %v69, 0.0
    %s71 = sld [smem:[#allocation2 + $0x1]]
    %v72 = vstv %s71
    %v73 = vmul.f32 %v35, %v72
    %s74 = sld [smem:[#allocation2 + $0x10]]
    %v75 = vstv %s74
    %v76 = vadd.f32 %v73, %v75
    %s77 = sld [smem:[#allocation2 + $0x4]]
    %v78 = vstv %s77
    %v79 = vmul.f32 %v35, %v78
    %v81 = vrot.slane %v79, 1
    %v83 = vadd.f32 %v76, %v81
    %s84 = sld [smem:[#allocation2 + $0x7]]
    %v85 = vstv %s84
    %v86 = vmul.f32 %v35, %v85
    %v88 = vrot.slane %v86, 2
    %v90 = vadd.f32 %v83, %v88
    %s91 = sld [smem:[#allocation2 + $0xa]]
    %v92 = vstv %s91
    %v93 = vmul.f32 %v35, %v92
    %v95 = vrot.slane %v93, 3
    %v97 = vadd.f32 %v90, %v95
    %s98 = sld [smem:[#allocation2 + $0xd]]
    %v99 = vstv %s98
    %v100 = vmul.f32 %v35, %v99
    %v102 = vrot.slane %v100, 4
    %v104 = vadd.f32 %v97, %v102
    %v105 = vmax.f32 %v104, 0.0
    %s106 = sld [smem:[#allocation2 + $0x2]]
    %v107 = vstv %s106
    %v108 = vmul.f32 %v35, %v107
    %s109 = sld [smem:[#allocation2 + $0x11]]
    %v110 = vstv %s109
    %v111 = vadd.f32 %v108, %v110
    %s112 = sld [smem:[#allocation2 + $0x5]]
    %v113 = vstv %s112
    %v114 = vmul.f32 %v35, %v113
    %v116 = vrot.slane %v114, 1
    %v118 = vadd.f32 %v111, %v116
    %s119 = sld [smem:[#allocation2 + $0x8]]
    %v120 = vstv %s119
    %v121 = vmul.f32 %v35, %v120
    %v123 = vrot.slane %v121, 2
    %v125 = vadd.f32 %v118, %v123
    %s126 = sld [smem:[#allocation2 + $0xb]]
    %v127 = vstv %s126
    %v128 = vmul.f32 %v35, %v127
    %v130 = vrot.slane %v128, 3
    %v132 = vadd.f32 %v125, %v130
    %s133 = sld [smem:[#allocation2 + $0xe]]
    %v134 = vstv %s133
    %v135 = vmul.f32 %v35, %v134
    %v137 = vrot.slane %v135, 4
    %v139 = vadd.f32 %v132, %v137
    %v140 = vmax.f32 %v139, 0.0
    %s141 = sld [smem:[#allocation2 + $0x12]]
    %v142 = vstv %s141
    %v143 = vmul.f32 %v70, %v142
    %s144 = sld [smem:[#allocation2 + $0x18]]
    %v145 = vstv %s144
    %v146 = vadd.f32 %v143, %v145
    %s147 = sld [smem:[#allocation2 + $0x14]]
    %v148 = vstv %s147
    %v149 = vmul.f32 %v105, %v148
    %v150 = vadd.f32 %v146, %v149
    %s151 = sld [smem:[#allocation2 + $0x16]]
    %v152 = vstv %s151
    %v153 = vmul.f32 %v140, %v152
    %v154 = vadd.f32 %v150, %v153
    %155 = vst [vmem:[#allocation7] sm:$0x1] %v154
    %s156 = sld [smem:[#allocation2 + $0x13]]
    %v157 = vstv %s156
    %v158 = vmul.f32 %v70, %v157
    %s159 = sld [smem:[#allocation2 + $0x19]]
    %v160 = vstv %s159
    %v161 = vadd.f32 %v158, %v160
    %s162 = sld [smem:[#allocation2 + $0x15]]
    %v163 = vstv %s162
    %v164 = vmul.f32 %v105, %v163
    %v165 = vadd.f32 %v161, %v164
    %s166 = sld [smem:[#allocation2 + $0x17]]
    %v167 = vstv %s166
    %v168 = vmul.f32 %v140, %v167
    %v169 = vadd.f32 %v165, %v168
    %170 = vst [vmem:[#allocation7 + $0x1] sm:$0x1] %v169
    // Predicated region
    $region18: #{tpu_custom_call.1} parent=1 // pred_check
      _
    $region19: #{tpu_custom_call.1} parent=1 // pred_check_branch
      %172 = sbr.rel (0) target = $region21
    $region20: #{tpu_custom_call.1} parent=1 // pred_region
      %s174 = ssub.s32 32, 32
      %175 = vsyncadd [#allocation4], %s174
      %s177 = sshll.u32 [#allocation7], 4
      %s178 = int_to_ptr.vmem [resolvable:$true] %s177
      %180 = dma.vmem_to_hbm [thread:$0]  %s178, 32, %s2, [#allocation4]
    $region21: #{tpu_custom_call.1} parent=1 // pred_fallthru
      _
    // Predicated region
    $region22: #{tpu_custom_call.1} parent=1 // pred_check
      _
    $region23: #{tpu_custom_call.1} parent=1 // pred_check_branch
      %182 = sbr.rel (0) target = $region25
    $region24: #{tpu_custom_call.1} parent=1 // pred_region
      %183 = dma.done [#allocation4], 32
    $region25: #{tpu_custom_call.1} parent=1 // pred_fallthru
      _
    %184 = vsyncpa [#allocation3], 1
    %185 = vsyncpa [#allocation4], 1
    %186 = vsyncpa [#allocation5], 1

</llo_original>
